<compile_context>
chip_gen: v6e
topology: v6e:2x2x1
jax: 0.10.0
libtpu: 0.0.40
codegen_flags: <defaults>
</compile_context>

<pallas_src>
import jax
import jax.numpy as jnp
from jax import lax
from jax.experimental import pallas as pl
from jax.experimental.pallas import tpu as pltpu

ALPHA = 0.2              # LeakyReLU negative slope
NEG_BIG = -9e15          # PyTorch mask value (used in references only)
_DENOM_EPS = 1e-30       # guards all-zero adjacency columns


# ---------------------------------------------------------------------------
# VMEM budget / block-size heuristics
# ---------------------------------------------------------------------------
def _vmem_budget_bytes():
    """~75% of the physical per-core VMEM (generation-aware)."""
    cap = 64 * 2**20                      # conservative fallback (v7x per-TC)
    try:
        cap = int(getattr(pltpu.get_tpu_info(), "vmem_capacity_bytes", cap))
    except Exception:
        pass
    return int(0.75 * cap)


def _lane_pad(x):
    return ((x + 127) // 128) * 128


def _vmem_bytes_estimate(bb, N, tj, F_in, F_out, mxu_bytes):
    fo2 = F_out + 2
    io = 2 * (bb * N * F_in * mxu_bytes             # h block (MXU dtype stream)
              + bb * N * tj                          # adjacency block (int8)
              + F_in * _lane_pad(fo2) * mxu_bytes)   # fused weight block
    io += bb * N * _lane_pad(F_out) * 4              # output block (f32, resident)
    scratch = bb * N * (_lane_pad(F_out) * mxu_bytes + 128 * 4)  # Wh + logits
    live = (bb * N * _lane_pad(fo2) * 4              # Wh_full at jt == 0
            + 6 * N * tj * 4                         # e/p/att/adj working set
            + N * tj * mxu_bytes                     # att cast for the MXU
            + N * _lane_pad(F_out) * 4)              # partial aggregation
    return io + scratch + live


def _pick_col_tile(N, vmem_budget):
    """Column-tile size for the (N, N) attention working set."""
    def live(tj):
        return 6 * N * tj * 4
    if N <= 512 or live(N) <= vmem_budget // 3:
        return N
    for tj in (2048, 1024, 512, 256, 128):
        if N % tj == 0 and live(tj) <= vmem_budget // 3:
            return tj
    return N   # TODO(synk): zero-pad ragged N to a multiple of 128 (see header)


def _pick_block_batch(B, N, tj, F_in, F_out, mxu_bytes, vmem_budget,
                      target_rows=512):
    """Largest divisor of B whose block fits the VMEM budget.  Keeps
    G = B // Bb >= 2 (so the 'parallel' axis can shard across v7x's two
    TensorCores) and stops growing once Bb*N >= target_rows (MXU M fill)."""
    max_bb = B // 2 if B >= 2 else 1
    best = 1
    for bb in range(1, B + 1):
        if B % bb or bb > max_bb:
            continue
        if _vmem_bytes_estimate(bb, N, tj, F_in, F_out, mxu_bytes) > vmem_budget:
            break
        best = bb
        if bb * N >= target_rows:
            break
    return best


# ---------------------------------------------------------------------------
# Kernel
# ---------------------------------------------------------------------------
def _make_gat_kernel(Bb, N, Tj, F_in, F_out, alpha, concat, mxu_dtype):
    fo2 = F_out + 2

    def kernel(h_ref, adj_ref, waug_ref, out_ref, wh_scr, lg_scr):
        # h_ref:    (1, Bb*N, F_in)  mxu_dtype  graphs of this block, flattened
        # adj_ref:  (Bb, N, Tj)      int8       0/1 mask, column tile jt
        # waug_ref: (F_in, F_out+2)  mxu_dtype  fused [W | W@a1 | W@a2]
        # out_ref:  (Bb, N, F_out)   f32        resident accumulator over jt
        # wh_scr:   (Bb*N, F_out)    mxu_dtype  Wh (aggregation rhs), cast hoisted
        # lg_scr:   (Bb*N, 2)        f32        [Wh@a1 | Wh@a2] logit columns
        jt = pl.program_id(1)
        last_jt = pl.num_programs(1) - 1

        @pl.when(jt == 0)
        def _project_and_init():
            # One fused MXU matmul per graph block:
            #   cols [:F_out] = Wh, [F_out] = Wh@a1, [F_out+1] = Wh@a2.
            wh_full = jnp.dot(h_ref[0], waug_ref[...],
                              preferred_element_type=jnp.float32)
            wh_scr[...] = wh_full[:, :F_out].astype(wh_scr.dtype)
            lg_scr[...] = wh_full[:, F_out:fo2]
            out_ref[...] = jnp.zeros_like(out_ref)

        def per_graph(b, carry):
            row0 = pl.multiple_of(b * N, N)             # graph-b node rows
            col0 = pl.multiple_of(b * N + jt * Tj, Tj)  # this column tile's rows
            wh1 = lg_scr[pl.ds(row0, N), :][:, 0:1]     # (N, 1)  Wh@a1, all rows
            wh2 = lg_scr[pl.ds(col0, Tj), :][:, 1:2]    # (Tj, 1) Wh@a2, tile rows

            e = wh1 + wh2.T                             # (N, Tj) raw logits
            e = jnp.where(e > 0, e, alpha * e)          # LeakyReLU
            adj = adj_ref[b].astype(jnp.float32)        # (N, Tj) 0/1 mask

            # softmax over axis 0 (rows) == PyTorch softmax(dim=1) on (B, N, N);
            # column tiles hold all rows, so no online rescaling is needed.
            # Mask folded into exp (shift-invariant): saves the -9e15 select.
            m = jnp.max(e, axis=0, keepdims=True)
            p = jnp.exp(e - m) * adj
            denom = jnp.maximum(jnp.sum(p, axis=0, keepdims=True), _DENOM_EPS)
            inv = pl.reciprocal(denom, approx=True)     # EUP vrcp
            inv = inv * (2.0 - denom * inv)             # one Newton step
            att = p * inv                               # (N, Tj)

            wh_t = wh_scr[pl.ds(col0, Tj), :]           # (Tj, F_out) mxu_dtype
            hp = jnp.dot(att.astype(wh_t.dtype), wh_t,
                         preferred_element_type=jnp.float32)  # (N, F_out)
            out_ref[b] = out_ref[b] + hp
            return carry

        lax.fori_loop(0, Bb, per_graph, 0)

        if concat:
            @pl.when(jt == last_jt)
            def _elu():
                x = out_ref[...]
                # ELU; exp is clamped at 0 so the discarded branch cannot
                # overflow.  (jnp.expm1 would be marginally more precise near
                # 0-, kept as exp-1 for lowering robustness.)
                out_ref[...] = jnp.where(
                    x > 0, x, jnp.exp(jnp.minimum(x, 0.0)) - 1.0)

    return kernel


# ---------------------------------------------------------------------------
# Wrapper
# ---------------------------------------------------------------------------
def gat_forward(h, A, W, a, *, alpha=ALPHA, concat=True, dropout=0.0,
                mxu_dtype=jnp.bfloat16, block_batch=None, col_tile=None):
    """GAT forward (inference).  h: (B, N, F_in), A: (B, N, N), W: (F_in, F_out),
    a: (2*F_out, 1)."""
    del dropout  # TODO(synk): attention dropout (training mode) not implemented
    B, N, F_in = h.shape
    F_out = W.shape[1]
    fo2 = F_out + 2
    mxu_bytes = jnp.dtype(mxu_dtype).itemsize

    budget = _vmem_budget_bytes()
    Tj = col_tile if col_tile is not None else _pick_col_tile(N, budget)
    assert N % Tj == 0, "column tile must divide N"
    JT = N // Tj

    Bb = block_batch if block_batch is not None else _pick_block_batch(
        B, N, Tj, F_in, F_out, mxu_bytes, budget)
    assert B % Bb == 0, "block_batch must divide the batch size"
    G = B // Bb

    # Fused projection [W | W@a1 | W@a2] -> one MXU matmul per graph block.
    a1, a2 = a[:F_out, :], a[F_out:, :]
    W_aug = jnp.concatenate([W, W @ a1, W @ a2], axis=1).astype(mxu_dtype)

    # Adjacency is only used as a mask -> stream it as a 0/1 int8 mask.
    adj = (A > 0).astype(jnp.int8)

    # Stream h at MXU precision and pre-flatten the Bb graphs of each block so
    # the projection is a single (Bb*N, F_in) @ (F_in, F_out+2) matmul.
    h_flat = h.astype(mxu_dtype).reshape(G, Bb * N, F_in)

    est = _vmem_bytes_estimate(Bb, N, Tj, F_in, F_out, mxu_bytes)
    vmem_limit = int(min(max(2 * est, 32 * 2**20), budget))

    kernel = _make_gat_kernel(Bb, N, Tj, F_in, F_out, float(alpha),
                              bool(concat), mxu_dtype)

    return pl.pallas_call(
        kernel,
        out_shape=jax.ShapeDtypeStruct((B, N, F_out), jnp.float32),
        grid_spec=pltpu.PrefetchScalarGridSpec(
            num_scalar_prefetch=0,
            grid=(G, JT),                        # (graph blocks, column tiles)
            in_specs=[
                pl.BlockSpec((1, Bb * N, F_in), lambda g, t: (g, 0, 0)),
                pl.BlockSpec((Bb, N, Tj), lambda g, t: (g, 0, t)),
                pl.BlockSpec((F_in, fo2), lambda g, t: (0, 0)),
            ],
            out_specs=pl.BlockSpec((Bb, N, F_out), lambda g, t: (g, 0, 0)),
            scratch_shapes=[
                pltpu.VMEM((Bb * N, F_out), mxu_dtype),
                pltpu.VMEM((Bb * N, 2), jnp.float32),
            ],
        ),
        compiler_params=pltpu.CompilerParams(
            dimension_semantics=("parallel", "arbitrary"),
            vmem_limit_bytes=vmem_limit),
    )(h_flat, adj, W_aug)


# ---------------------------------------------------------------------------
# References
# ---------------------------------------------------------------------------
def gat_reference(h, A, W, a, alpha=ALPHA, concat=True):
    """Pure-JAX f32 mirror of the PyTorch forward (inference mode)."""
    F_out = W.shape[1]
    Wh = jnp.einsum("bnf,fo->bno", h, W)
    e = Wh @ a[:F_out, :] + jnp.swapaxes(Wh @ a[F_out:, :], 1, 2)
    e = jnp.where(e > 0, e, alpha * e)
    att = jax.nn.softmax(jnp.where(A > 0, e, NEG_BIG), axis=1)
    hp = jnp.einsum("bij,bjo->bio", att, Wh)
    return jnp.where(hp > 0, hp, jnp.expm1(hp)) if concat else hp


def gat_reference_matched(h, A, W, a, mxu_dtype, alpha=ALPHA, concat=True):
    """Mirrors the kernel's math (fused W_aug, reduced-precision MXU operands,
    f32 accumulation) so it can be compared tightly against the kernel."""
    F_out = W.shape[1]
    W_aug = jnp.concatenate(
        [W, W @ a[:F_out, :], W @ a[F_out:, :]], axis=1).astype(mxu_dtype)
    Wh_full = jnp.einsum("bnf,fo->bno", h.astype(mxu_dtype), W_aug,
                         preferred_element_type=jnp.float32)
    Wh = Wh_full[..., :F_out]
    e = Wh_full[..., F_out:F_out + 1] + jnp.swapaxes(Wh_full[..., F_out + 1:], 1, 2)
    e = jnp.where(e > 0, e, alpha * e)
    att = jax.nn.softmax(jnp.where(A > 0, e, NEG_BIG), axis=1)
    hp = jnp.einsum("bij,bjo->bio", att.astype(mxu_dtype), Wh.astype(mxu_dtype),
                    preferred_element_type=jnp.float32)
    if concat:
        hp = jnp.where(hp > 0, hp, jnp.exp(jnp.minimum(hp, 0.0)) - 1.0)
    return hp


def xavier_uniform(key, shape, gain=1.414):
    fan_in, fan_out = shape[0], shape[1]
    limit = gain * jnp.sqrt(6.0 / (fan_in + fan_out))
    return jax.random.uniform(key, shape, jnp.float32, -limit, limit)


# ---------------------------------------------------------------------------
# Demo
# ---------------------------------------------------------------------------
if __name__ == "__main__":
    key = jax.random.PRNGKey(0)
    k_h, k_A, k_W, k_a = jax.random.split(key, 4)

    B, N = 2, 16
    in_features, out_features = 8, 8

    h = jax.random.normal(k_h, (B, N, in_features), dtype=jnp.float32)
    # dense adjacency with ~50% edges, self-loops guaranteed
    A = (jax.random.uniform(k_A, (B, N, N)) > 0.5).astype(jnp.float32)
    A = jnp.maximum(A, jnp.eye(N, dtype=jnp.float32)[None, :, :])

    W = xavier_uniform(k_W, (in_features, out_features))
    a = xavier_uniform(k_a, (2 * out_features, 1))

    # 1) Exact-precision configuration (f32 MXU operands) vs PyTorch-faithful
    #    reference.
    out_f32 = gat_forward(h, A, W, a, mxu_dtype=jnp.float32)
    jax.block_until_ready(out_f32)
    ref = gat_reference(h, A, W, a)
    assert jnp.allclose(out_f32, ref, atol=1e-3, rtol=1e-3), "f32 kernel mismatch"

    # 2) Performance configuration (bf16 MXU operands / bf16 h stream, f32
    #    accumulation) vs a reference applying the same operand precision.
    out_bf16 = gat_forward(h, A, W, a, mxu_dtype=jnp.bfloat16)
    jax.block_until_ready(out_bf16)
    ref_bf16 = gat_reference_matched(h, A, W, a, jnp.bfloat16)
    assert jnp.allclose(out_bf16, ref_bf16, atol=2e-3, rtol=2e-3), "bf16 kernel mismatch"

    print("KERNEL_OK")
</pallas_src>

<mosaic_0001>
module attributes {stable_mosaic.version = 11 : i64} {
  func.func @kernel(%arg0: i32, %arg1: i32, %arg2: memref<1x16x8xf32, #tpu.memory_space<vmem>>, %arg3: memref<1x16x16xi8, #tpu.memory_space<vmem>>, %arg4: memref<8x10xf32, #tpu.memory_space<vmem>>, %arg5: memref<1x16x8xf32, #tpu.memory_space<vmem>>, %arg6: memref<16x8xf32, #tpu.memory_space<vmem>>, %arg7: memref<16x2xf32, #tpu.memory_space<vmem>>) attributes {dimension_semantics = [#tpu.dimension_semantics<parallel>, #tpu.dimension_semantics<arbitrary>], iteration_bounds = array<i64: 2, 1>, scalar_prefetch = 0 : i64, scratch_operands = 2 : i64, tpu.core_type = #tpu.core_type<tc>, window_params = [{transform_indices = @transform_0, window_bounds = array<i64: 1, 16, 8>}, {transform_indices = @transform_1, window_bounds = array<i64: 1, 16, 16>}, {pipeline_mode = #tpu.pipeline_mode<synchronous>, transform_indices = @transform_2, window_bounds = array<i64: 8, 10>}, {transform_indices = @transform_3, window_bounds = array<i64: 1, 16, 8>}]} {
    %c0_i32 = arith.constant 0 : i32
    %0 = arith.cmpi eq, %arg1, %c0_i32 : i32
    %1 = arith.extui %0 : i1 to i32
    %c0_i32_0 = arith.constant 0 : i32
    %2 = arith.cmpi ne, %1, %c0_i32_0 : i32
    scf.if %2 {
      %c0_20 = arith.constant 0 : index
      %c0_21 = arith.constant 0 : index
      %c0_22 = arith.constant 0 : index
      %59 = vector.load %arg2[%c0_20, %c0_21, %c0_22] : memref<1x16x8xf32, #tpu.memory_space<vmem>>, vector<1x16x8xf32>
      %60 = vector.shape_cast %59 : vector<1x16x8xf32> to vector<16x8xf32>
      %c0_23 = arith.constant 0 : index
      %c0_24 = arith.constant 0 : index
      %61 = vector.load %arg4[%c0_23, %c0_24] : memref<8x10xf32, #tpu.memory_space<vmem>>, vector<8x10xf32>
      %cst_25 = arith.constant dense<0.000000e+00> : vector<16x10xf32>
      %62 = tpu.matmul %60, %61, %cst_25 {dimension_numbers = #tpu.dot_dimension_numbers<[1], [0], [0], [1], [0, 0, 1, 1], [], []>} : vector<16x8xf32>, vector<8x10xf32>, vector<16x10xf32> -> vector<16x10xf32>
      %63 = vector.extract_strided_slice %62 {offsets = [0, 0], sizes = [16, 8], strides = [1, 1]} : vector<16x10xf32> to vector<16x8xf32>
      %c0_26 = arith.constant 0 : index
      %c0_27 = arith.constant 0 : index
      %64 = vector.load %arg6[%c0_26, %c0_27] : memref<16x8xf32, #tpu.memory_space<vmem>>, vector<16x8xf32>
      tpu.vector_store %arg6[%c0_26, %c0_27], %63 {strides = array<i32>} : memref<16x8xf32, #tpu.memory_space<vmem>>, vector<16x8xf32>,
      %65 = vector.extract_strided_slice %62 {offsets = [0, 8], sizes = [16, 2], strides = [1, 1]} : vector<16x10xf32> to vector<16x2xf32>
      %c0_28 = arith.constant 0 : index
      %c0_29 = arith.constant 0 : index
      %66 = vector.load %arg7[%c0_28, %c0_29] : memref<16x2xf32, #tpu.memory_space<vmem>>, vector<16x2xf32>
      tpu.vector_store %arg7[%c0_28, %c0_29], %65 {strides = array<i32>} : memref<16x2xf32, #tpu.memory_space<vmem>>, vector<16x2xf32>,
      %cst_30 = arith.constant 0.000000e+00 : f32
      %67 = vector.broadcast %cst_30 : f32 to vector<1x16x8xf32>
      %c0_31 = arith.constant 0 : index
      %c0_32 = arith.constant 0 : index
      %c0_33 = arith.constant 0 : index
      %68 = vector.load %arg5[%c0_31, %c0_32, %c0_33] : memref<1x16x8xf32, #tpu.memory_space<vmem>>, vector<1x16x8xf32>
      tpu.vector_store %arg5[%c0_31, %c0_32, %c0_33], %67 {strides = array<i32>} : memref<1x16x8xf32, #tpu.memory_space<vmem>>, vector<1x16x8xf32>,
    } else {
    }
    %c0_i32_1 = arith.constant 0 : i32
    %c16_i32 = arith.constant 16 : i32
    %3 = arith.muli %c0_i32_1, %c16_i32 : i32
    %4 = tpu.assume_multiple %3, 16 : i32
    %c16_i32_2 = arith.constant 16 : i32
    %5 = arith.muli %c0_i32_1, %c16_i32_2 : i32
    %c16_i32_3 = arith.constant 16 : i32
    %6 = arith.muli %arg1, %c16_i32_3 : i32
    %7 = arith.addi %5, %6 : i32
    %8 = tpu.assume_multiple %7, 16 : i32
    %9 = arith.index_cast %4 : i32 to index
    %c0 = arith.constant 0 : index
    %10 = vector.load %arg7[%9, %c0] : memref<16x2xf32, #tpu.memory_space<vmem>>, vector<16x2xf32>
    %11 = vector.extract_strided_slice %10 {offsets = [0, 0], sizes = [16, 1], strides = [1, 1]} : vector<16x2xf32> to vector<16x1xf32>
    %12 = arith.index_cast %8 : i32 to index
    %c0_4 = arith.constant 0 : index
    %13 = vector.load %arg7[%12, %c0_4] : memref<16x2xf32, #tpu.memory_space<vmem>>, vector<16x2xf32>
    %14 = vector.extract_strided_slice %13 {offsets = [0, 1], sizes = [16, 1], strides = [1, 1]} : vector<16x2xf32> to vector<16x1xf32>
    %15 = tpu.transpose %14, [1, 0] : vector<16x1xf32> -> vector<1x16xf32>
    %16 = vector.broadcast %11 : vector<16x1xf32> to vector<16x16xf32>
    %17 = vector.broadcast %15 : vector<1x16xf32> to vector<16x16xf32>
    %18 = arith.addf %16, %17 : vector<16x16xf32>
    %cst = arith.constant 0.000000e+00 : f32
    %19 = vector.broadcast %cst : f32 to vector<16x16xf32>
    %20 = arith.cmpf ogt, %18, %19 : vector<16x16xf32>
    %cst_5 = arith.constant 2.000000e-01 : f32
    %21 = vector.broadcast %cst_5 : f32 to vector<16x16xf32>
    %22 = arith.mulf %21, %18 : vector<16x16xf32>
    %23 = arith.select %20, %18, %22 : vector<16x16xi1>, vector<16x16xf32>
    %24 = arith.index_cast %c0_i32_1 : i32 to index
    %c0_6 = arith.constant 0 : index
    %c0_7 = arith.constant 0 : index
    %25 = vector.load %arg3[%24, %c0_6, %c0_7] : memref<1x16x16xi8, #tpu.memory_space<vmem>>, vector<1x16x16xi8>
    %26 = vector.shape_cast %25 : vector<1x16x16xi8> to vector<16x16xi8>
    %27 = arith.sitofp %26 : vector<16x16xi8> to vector<16x16xf32>
    %cst_8 = arith.constant dense<0xFF800000> : vector<16xf32>
    %28 = vector.multi_reduction <maximumf>, %23, %cst_8 [0] : vector<16x16xf32> to vector<16xf32>
    %29 = vector.shape_cast %28 : vector<16xf32> to vector<1x16xf32>
    %30 = vector.broadcast %29 : vector<1x16xf32> to vector<16x16xf32>
    %31 = arith.subf %23, %30 : vector<16x16xf32>
    %32 = math.exp %31 : vector<16x16xf32>
    %33 = arith.mulf %32, %27 : vector<16x16xf32>
    %cst_9 = arith.constant dense<0.000000e+00> : vector<16xf32>
    %34 = vector.multi_reduction <add>, %33, %cst_9 [0] : vector<16x16xf32> to vector<16xf32>
    %35 = vector.shape_cast %34 : vector<16xf32> to vector<1x16xf32>
    %cst_10 = arith.constant 1.000000e-30 : f32
    %36 = vector.broadcast %cst_10 : f32 to vector<1x16xf32>
    %37 = arith.maximumf %35, %36 : vector<1x16xf32>
    %38 = tpu.reciprocal %37 {approx = true} : vector<1x16xf32> -> vector<1x16xf32>
    %39 = arith.mulf %37, %38 : vector<1x16xf32>
    %cst_11 = arith.constant 2.000000e+00 : f32
    %40 = vector.broadcast %cst_11 : f32 to vector<1x16xf32>
    %41 = arith.subf %40, %39 : vector<1x16xf32>
    %42 = arith.mulf %38, %41 : vector<1x16xf32>
    %43 = vector.broadcast %42 : vector<1x16xf32> to vector<16x16xf32>
    %44 = arith.mulf %33, %43 : vector<16x16xf32>
    %45 = arith.index_cast %8 : i32 to index
    %c0_12 = arith.constant 0 : index
    %46 = vector.load %arg6[%45, %c0_12] : memref<16x8xf32, #tpu.memory_space<vmem>>, vector<16x8xf32>
    %cst_13 = arith.constant dense<0.000000e+00> : vector<16x8xf32>
    %47 = tpu.matmul %44, %46, %cst_13 {dimension_numbers = #tpu.dot_dimension_numbers<[1], [0], [0], [1], [0, 0, 1, 1], [], []>} : vector<16x16xf32>, vector<16x8xf32>, vector<16x8xf32> -> vector<16x8xf32>
    %48 = arith.index_cast %c0_i32_1 : i32 to index
    %c0_14 = arith.constant 0 : index
    %c0_15 = arith.constant 0 : index
    %49 = vector.load %arg5[%48, %c0_14, %c0_15] : memref<1x16x8xf32, #tpu.memory_space<vmem>>, vector<1x16x8xf32>
    %50 = vector.shape_cast %49 : vector<1x16x8xf32> to vector<16x8xf32>
    %51 = arith.addf %50, %47 : vector<16x8xf32>
    %52 = arith.index_cast %c0_i32_1 : i32 to index
    %c0_16 = arith.constant 0 : index
    %c0_17 = arith.constant 0 : index
    %53 = vector.load %arg5[%52, %c0_16, %c0_17] : memref<1x16x8xf32, #tpu.memory_space<vmem>>, vector<1x16x8xf32>
    %54 = vector.shape_cast %53 : vector<1x16x8xf32> to vector<16x8xf32>
    %55 = vector.shape_cast %51 : vector<16x8xf32> to vector<1x16x8xf32>
    tpu.vector_store %arg5[%52, %c0_16, %c0_17], %55 {strides = array<i32>} : memref<1x16x8xf32, #tpu.memory_space<vmem>>, vector<1x16x8xf32>,
    %c1_i32 = arith.constant 1 : i32
    %c0_i32_18 = arith.constant 0 : i32
    %56 = arith.cmpi eq, %arg1, %c0_i32_18 : i32
    %57 = arith.extui %56 : i1 to i32
    %c0_i32_19 = arith.constant 0 : i32
    %58 = arith.cmpi ne, %57, %c0_i32_19 : i32
    scf.if %58 {
      %c0_20 = arith.constant 0 : index
      %c0_21 = arith.constant 0 : index
      %c0_22 = arith.constant 0 : index
      %59 = vector.load %arg5[%c0_20, %c0_21, %c0_22] : memref<1x16x8xf32, #tpu.memory_space<vmem>>, vector<1x16x8xf32>
      %cst_23 = arith.constant 0.000000e+00 : f32
      %60 = vector.broadcast %cst_23 : f32 to vector<1x16x8xf32>
      %61 = arith.cmpf ogt, %59, %60 : vector<1x16x8xf32>
      %cst_24 = arith.constant 0.000000e+00 : f32
      %62 = vector.broadcast %cst_24 : f32 to vector<1x16x8xf32>
      %63 = arith.minimumf %59, %62 : vector<1x16x8xf32>
      %64 = math.exp %63 : vector<1x16x8xf32>
      %cst_25 = arith.constant 1.000000e+00 : f32
      %65 = vector.broadcast %cst_25 : f32 to vector<1x16x8xf32>
      %66 = arith.subf %64, %65 : vector<1x16x8xf32>
      %67 = arith.select %61, %59, %66 : vector<1x16x8xi1>, vector<1x16x8xf32>
      %c0_26 = arith.constant 0 : index
      %c0_27 = arith.constant 0 : index
      %c0_28 = arith.constant 0 : index
      %68 = vector.load %arg5[%c0_26, %c0_27, %c0_28] : memref<1x16x8xf32, #tpu.memory_space<vmem>>, vector<1x16x8xf32>
      tpu.vector_store %arg5[%c0_26, %c0_27, %c0_28], %67 {strides = array<i32>} : memref<1x16x8xf32, #tpu.memory_space<vmem>>, vector<1x16x8xf32>,
    } else {
    }
    return
  }
  func.func @transform_0(%arg0: i32, %arg1: i32) -> (i32, i32, i32) {
    %c0_i32 = arith.constant 0 : i32
    %c0_i32_0 = arith.constant 0 : i32
    %c0_i32_1 = arith.constant 0 : i32
    return %arg0, %c0_i32, %c0_i32_0 : i32, i32, i32
  }
  func.func @transform_1(%arg0: i32, %arg1: i32) -> (i32, i32, i32) {
    %c0_i32 = arith.constant 0 : i32
    %c0_i32_0 = arith.constant 0 : i32
    return %arg0, %c0_i32, %arg1 : i32, i32, i32
  }
  func.func @transform_2(%arg0: i32, %arg1: i32) -> (i32, i32) {
    %c0_i32 = arith.constant 0 : i32
    %c0_i32_0 = arith.constant 0 : i32
    %c0_i32_1 = arith.constant 0 : i32
    return %c0_i32, %c0_i32_0 : i32, i32
  }
  func.func @transform_3(%arg0: i32, %arg1: i32) -> (i32, i32, i32) {
    %c0_i32 = arith.constant 0 : i32
    %c0_i32_0 = arith.constant 0 : i32
    %c0_i32_1 = arith.constant 0 : i32
    return %arg0, %c0_i32, %c0_i32_0 : i32, i32, i32
  }
}

</mosaic_0001>

<llo_original>
// kernel: tpu_custom_call.1
$region0: #{tpu_custom_call.1}
  #allocation0 [shape = 'u32[]', space=smem, size = 0x4, offset = 0x4, fixed_abs, tag = 'smem constant byte address 0x4 - core index']
  #allocation1 [shape = 'u32[144,128]{1,0:T(1,128)}', space=vmem, size = 0x12000, scoped, tag = 'internal scratch']
  #allocation2 [shape = 'f32[16,8]{1,0:T(8,128)}', space=vmem, size = 0x2000, scoped, tag = 'scratch operand']
  #allocation3 [shape = 'f32[16,2]{1,0:T(8,128)}', space=vmem, size = 0x2000, scoped, tag = 'scratch operand']
  %s0 = inlined_call_operand.vmem [shape: f32[2,16,8], index: 0, kind: input, shape index: {}]
  %s1 = inlined_call_operand.vmem [shape: s8[2,16,16], index: 1, kind: input, shape index: {}]
  %s2 = inlined_call_operand.vmem [shape: f32[8,10], index: 2, kind: input, shape index: {}]
  %s3 = inlined_call_operand.vmem [shape: f32[2,16,8], index: 3, kind: output, shape index: {}]
  %s4 = sld [smem:[#allocation0]]
  $region53: #{tpu_custom_call.1} parent=0
    _
  %s6 = ssub.s32 1, %s4
  %s7 = scalar_select 0, %s6, %s4
  loop: start=0, step=1, limit=4
  $region2: #{tpu_custom_call.1} parent=0 // loop_pre_header
    _
  $region3: #{tpu_custom_call.1} parent=0 // loop_header
    %s9 = sphi 0, %s13
    %p10 = scmp.ge.s32.totalorder %s9, 4
    %s16 = sphi 0, %s28
    %s17 = sphi 0, %s24
    %s18 = sphi 0, %s16
    %s19 = sphi 0, %s17
    %s20 = sphi 0, %s18
    %s21 = sphi 0, %s19
    %s31 = sphi 0, %s33
    %s34 = sphi 0, %s31
    %s35 = sphi 0, %s34
    %s51 = sphi 0, %s35
    %s59 = sphi 0, %s61
    %s62 = sphi 0, %s59
    %s63 = sphi 0, %s62
    %s79 = sphi 0, %s63
    %s83 = sphi 0, %s83
    %s85 = sphi 0, %s83
    %s86 = sphi 0, %s85
    %s100 = sphi 0, %s86
    %s106 = sphi 0, %s108
    %s109 = sphi 0, %s106
    %s110 = sphi 0, %s109
    %s126 = sphi 0, %s110
  $region4: #{tpu_custom_call.1} parent=0 // loop_header_branch
    %12 = sbr.rel (%p10) target = $region8
  $region5: #{tpu_custom_call.1} parent=0 // loop_body
    %s14 = ssub.s32 %s9, 1
    %s15 = ssub.s32 %s9, 2
    %s22 = sadd.s32 1, %s17
    %p23 = scmp.ge.s32.totalorder %s22, 1
    %s24 = scalar_select %p23, 0, %s22
    %s25 = sadd.s32 1, %s16
    %s26 = scalar_select %p23, %s25, %s16
    %p27 = scmp.ge.s32.totalorder %s26, 2
    %s28 = scalar_select %p27, 0, %s26
    %s29 = ssub.s32 %s16, %s28
    %p30 = scmp.eq.s32.totalorder %s29, 0
    %s32 = sadd.s32 %s31, 1
    %s33 = scalar_select %p30, %s31, %s32
    %p36 = pneg %p30
    %p37 = scmp.eq.s32.totalorder %s9, 1
    %p38 = por %p36, %p37
    %p39 = scmp.ne.s32.totalorder %s31, %s34
    %p40 = scmp.eq.s32.totalorder %s9, 0
    %p41 = por %p39, %p40
    %p42 = scmp.ne.s32.totalorder %s31, %s34
    %p43 = scmp.eq.s32.totalorder %s14, 1
    %p44 = por %p42, %p43
    %p45 = scmp.ne.s32.totalorder %s34, %s35
    %p46 = scmp.eq.s32.totalorder %s14, 0
    %p47 = por %p45, %p46
    %p48 = scmp.ne.s32.totalorder %s34, %s35
    %p49 = scmp.eq.s32.totalorder %s15, 1
    %p50 = por %p48, %p49
    %p52 = scmp.ne.s32.totalorder %s35, %s51
    %p53 = scmp.eq.s32.totalorder %s15, 0
    %p54 = por %p52, %p53
    %s55 = ssub.s32 %s16, %s28
    %s56 = ssub.s32 %s17, %s24
    %s57 = sor.u32 %s55, %s56
    %p58 = scmp.eq.s32.totalorder %s57, 0
    %s60 = sadd.s32 %s59, 1
    %s61 = scalar_select %p58, %s59, %s60
    %p64 = pneg %p58
    %p65 = scmp.eq.s32.totalorder %s9, 1
    %p66 = por %p64, %p65
    %p67 = scmp.ne.s32.totalorder %s59, %s62
    %p68 = scmp.eq.s32.totalorder %s9, 0
    %p69 = por %p67, %p68
    %p70 = scmp.ne.s32.totalorder %s59, %s62
    %p71 = scmp.eq.s32.totalorder %s14, 1
    %p72 = por %p70, %p71
    %p73 = scmp.ne.s32.totalorder %s62, %s63
    %p74 = scmp.eq.s32.totalorder %s14, 0
    %p75 = por %p73, %p74
    %p76 = scmp.ne.s32.totalorder %s62, %s63
    %p77 = scmp.eq.s32.totalorder %s15, 1
    %p78 = por %p76, %p77
    %p80 = scmp.ne.s32.totalorder %s63, %s79
    %p81 = scmp.eq.s32.totalorder %s15, 0
    %p82 = por %p80, %p81
    %s84 = sadd.s32 %s83, 1
    %p87 = scmp.eq.s32.totalorder %s9, 1
    %p88 = scmp.ne.s32.totalorder %s83, %s85
    %p89 = scmp.eq.s32.totalorder %s9, 0
    %p90 = por %p88, %p89
    %p91 = scmp.ne.s32.totalorder %s83, %s85
    %p92 = scmp.eq.s32.totalorder %s14, 1
    %p93 = por %p91, %p92
    %p94 = scmp.ne.s32.totalorder %s85, %s86
    %p95 = scmp.eq.s32.totalorder %s14, 0
    %p96 = por %p94, %p95
    %p97 = scmp.ne.s32.totalorder %s85, %s86
    %p98 = scmp.eq.s32.totalorder %s15, 1
    %p99 = por %p97, %p98
    %p101 = scmp.ne.s32.totalorder %s86, %s100
    %p102 = scmp.eq.s32.totalorder %s15, 0
    %p103 = por %p101, %p102
    %s104 = ssub.s32 %s16, %s28
    %p105 = scmp.eq.s32.totalorder %s104, 0
    %s107 = sadd.s32 %s106, 1
    %s108 = scalar_select %p105, %s106, %s107
    %p111 = pneg %p105
    %p112 = scmp.eq.s32.totalorder %s9, 1
    %p113 = por %p111, %p112
    %p114 = scmp.ne.s32.totalorder %s106, %s109
    %p115 = scmp.eq.s32.totalorder %s9, 0
    %p116 = por %p114, %p115
    %p117 = scmp.ne.s32.totalorder %s106, %s109
    %p118 = scmp.eq.s32.totalorder %s14, 1
    %p119 = por %p117, %p118
    %p120 = scmp.ne.s32.totalorder %s109, %s110
    %p121 = scmp.eq.s32.totalorder %s14, 0
    %p122 = por %p120, %p121
    %p123 = scmp.ne.s32.totalorder %s109, %s110
    %p124 = scmp.eq.s32.totalorder %s15, 1
    %p125 = por %p123, %p124
    %p127 = scmp.ne.s32.totalorder %s110, %s126
    %p128 = scmp.eq.s32.totalorder %s15, 0
    %p129 = por %p127, %p128
    %p130 = scmp.le.s32.totalorder 1, %s9
    %p131 = scmp.lt.s32.totalorder %s9, 3
    %p132 = pnand %p130, %p131
    %p133 = pneg %p132
    // Predicated region
    $region9: #{tpu_custom_call.1} parent=5 // pred_check
      _
    $region10: #{tpu_custom_call.1} parent=5 // pred_check_branch
      %135 = sbr.rel (%p132) target = $region12
    $region11: #{tpu_custom_call.1} parent=5 // pred_region
      %s136 = ssub.s32 %s9, 1
      // Predicated region
      $region13: #{tpu_custom_call.1} parent=11 // pred_check
        %p137 = pneg %p96
      $region14: #{tpu_custom_call.1} parent=11 // pred_check_branch
        %139 = sbr.rel (%p137) target = $region16
      $region15: #{tpu_custom_call.1} parent=11 // pred_region
        _
      $region16: #{tpu_custom_call.1} parent=11 // pred_fallthru
        _
    $region12: #{tpu_custom_call.1} parent=5 // pred_fallthru
      _
    %p140 = scmp.lt.s32.totalorder %s9, 2
    // Predicated region
    $region17: #{tpu_custom_call.1} parent=5 // pred_check
      %p141 = pneg %p140
    $region18: #{tpu_custom_call.1} parent=5 // pred_check_branch
      %143 = sbr.rel (%p141) target = $region20
    $region19: #{tpu_custom_call.1} parent=5 // pred_region
      // Predicated region
      $region21: #{tpu_custom_call.1} parent=19 // pred_check
        %p144 = pneg %p41
      $region22: #{tpu_custom_call.1} parent=19 // pred_check_branch
        %146 = sbr.rel (%p144) target = $region24
      $region23: #{tpu_custom_call.1} parent=19 // pred_region
        %p147 = scmp.lt.s32.totalorder %s16, 1
        %s148 = scalar_select %p147, %s16, 1
        %s149 = smul.addr %s148, 2
        %s150 = smul.addr %s149, 8
        %s151 = scalar_lea.vmem %s0, %s150
      $region24: #{tpu_custom_call.1} parent=19 // pred_fallthru
        _
      // Predicated region
      $region25: #{tpu_custom_call.1} parent=19 // pred_check
        %p152 = pneg %p69
      $region26: #{tpu_custom_call.1} parent=19 // pred_check_branch
        %154 = sbr.rel (%p152) target = $region28
      $region27: #{tpu_custom_call.1} parent=19 // pred_region
        %p155 = scmp.lt.s32.totalorder %s16, 1
        %s156 = scalar_select %p155, %s16, 1
        %p157 = scmp.lt.s32.totalorder %s17, 0
        %s158 = scalar_select %p157, %s17, 0
        %s159 = smul.addr %s156, 2
        %s160 = sadd.s32 %s158, %s159
        %s161 = smul.addr %s160, 2
        %s162 = scalar_lea.vmem %s1, %s161
      $region28: #{tpu_custom_call.1} parent=19 // pred_fallthru
        _
    $region20: #{tpu_custom_call.1} parent=5 // pred_fallthru
      _
    %p163 = scmp.le.s32.totalorder 1, %s9
    %p164 = scmp.lt.s32.totalorder %s9, 3
    %p165 = pnand %p163, %p164
    %p166 = pneg %p165
    // Predicated region
    $region29: #{tpu_custom_call.1} parent=5 // pred_check
      _
    $region30: #{tpu_custom_call.1} parent=5 // pred_check_branch
      %168 = sbr.rel (%p165) target = $region32
    $region31: #{tpu_custom_call.1} parent=5 // pred_region
      %s169 = ssub.s32 %s9, 1
      %p170 = scmp.lt.s32.totalorder %s18, 1
      %s171 = scalar_select %p170, %s18, 1
      %s172 = smul.addr %s171, 2
      %s173 = smul.addr %s172, 8
      %s174 = scalar_lea.vmem %s0, %s173
      %p175 = pneg %p47
      %p176 = pneg %p44
      %p177 = scmp.lt.s32.totalorder %s18, 1
      %s178 = scalar_select %p177, %s18, 1
      %p179 = scmp.lt.s32.totalorder %s19, 0
      %s180 = scalar_select %p179, %s19, 0
      %s181 = smul.addr %s178, 2
      %s182 = sadd.s32 %s180, %s181
      %s183 = smul.addr %s182, 2
      %s184 = scalar_lea.vmem %s1, %s183
      %p185 = pneg %p75
      %p186 = pneg %p72
      %p187 = pneg %p96
      %p188 = pneg %p93
      %p189 = pneg %p122
      %p190 = pneg %p119
      %p191 = scmp.lt.s32.totalorder %s18, 1
      %s192 = scalar_select %p191, %s18, 1
      %s193 = smul.addr %s192, 2
      %s194 = smul.addr %s193, 8
      %s195 = scalar_lea.vmem %s3, %s194
      %p196 = scmp.lt.s32.totalorder %s18, 1
      %s197 = scalar_select %p196, %s18, 1
      %s198 = smul.addr %s197, 2
      %s199 = smul.addr %s198, 8
      %s200 = scalar_lea.vmem %s0, %s199
      %p201 = scmp.lt.s32.totalorder %s18, 1
      %s202 = scalar_select %p201, %s18, 1
      %p203 = scmp.lt.s32.totalorder %s19, 0
      %s204 = scalar_select %p203, %s19, 0
      %s205 = smul.addr %s202, 2
      %s206 = sadd.s32 %s204, %s205
      %s207 = smul.addr %s206, 2
      %s208 = scalar_lea.vmem %s1, %s207
      %p209 = scmp.lt.s32.totalorder %s18, 1
      %s210 = scalar_select %p209, %s18, 1
      %s211 = smul.addr %s210, 2
      %s212 = smul.addr %s211, 8
      %s213 = scalar_lea.vmem %s3, %s212
      %p214 = scmp.eq.s32.totalorder %s19, 0
      // Predicated region
      $region33: #{tpu_custom_call.1} parent=31 // pred_check
        %p215 = pneg %p214
      $region34: #{tpu_custom_call.1} parent=31 // pred_check_branch
        %217 = sbr.rel (%p215) target = $region36
      $region35: #{tpu_custom_call.1} parent=31 // pred_region
        %v218 = vld [vmem:[%s200] sm:$0xff]
        %v219 = vld [vmem:[%s200 + $0x8] sm:$0xff]
        %v220 = vld [vmem:[%s2] sm:$0xff]
        %vm221 = vcmask 64512
        %v223 = vsel %vm221, %v218, 0
        %v226 = vsel %vm221, %v219, 0
        %228 = vmatprep.subr.mxu0 0.0
        %229 = vmatpush1.msra.mxu0 0.0
        %230 = vmatprep.subr.mxu0 0.0
        %231 = vmatpush1.msra.mxu0 0.0
        %232 = vmatprep.subr.mxu0 0.0
        %233 = vmatpush1.msra.mxu0 0.0
        %234 = vmatprep.subr.mxu0 0.0
        %235 = vmatpush1.msra.mxu0 0.0
        %236 = vmatprep.subr.mxu0 0.0
        %237 = vmatpush1.msra.mxu0 0.0
        %238 = vmatprep.subr.mxu0 0.0
        %239 = vmatpush1.msra.mxu0 0.0
        %240 = vmatprep.subr.mxu0 0.0
        %241 = vmatpush1.msra.mxu0 0.0
        %242 = vmatprep.subr.mxu0 0.0
        %243 = vmatpush1.msra.mxu0 0.0
        %244 = vmatprep.subr.mxu0 0.0
        %245 = vmatpush1.msra.mxu0 0.0
        %246 = vmatprep.subr.mxu0 0.0
        %247 = vmatpush1.msra.mxu0 0.0
        %248 = vmatprep.subr.mxu0 0.0
        %249 = vmatpush1.msra.mxu0 0.0
        %250 = vmatprep.subr.mxu0 0.0
        %251 = vmatpush1.msra.mxu0 0.0
        %252 = vmatprep.subr.mxu0 0.0
        %253 = vmatpush1.msra.mxu0 0.0
        %254 = vmatprep.subr.mxu0 0.0
        %255 = vmatpush1.msra.mxu0 0.0
        %256 = vmatprep.subr.mxu0 0.0
        %257 = vmatpush1.msra.mxu0 0.0
        %258 = vmatprep.subr.mxu0 0.0
        %259 = vmatpush1.msra.mxu0 %v220
        %260 = vmatprep.subr.mxu0 0.0
        %261 = vmatpush2.msra.mxu0 0.0
        %262 = vmatprep.subr.mxu0 0.0
        %263 = vmatpush2.msra.mxu0 0.0
        %264 = vmatprep.subr.mxu0 0.0
        %265 = vmatpush2.msra.mxu0 0.0
        %266 = vmatprep.subr.mxu0 0.0
        %267 = vmatpush2.msra.mxu0 0.0
        %268 = vmatprep.subr.mxu0 0.0
        %269 = vmatpush2.msra.mxu0 0.0
        %270 = vmatprep.subr.mxu0 0.0
        %271 = vmatpush2.msra.mxu0 0.0
        %272 = vmatprep.subr.mxu0 0.0
        %273 = vmatpush2.msra.mxu0 0.0
        %274 = vmatprep.subr.mxu0 0.0
        %275 = vmatpush2.msra.mxu0 0.0
        %276 = vmatprep.subr.mxu0 0.0
        %277 = vmatpush2.msra.mxu0 0.0
        %278 = vmatprep.subr.mxu0 0.0
        %279 = vmatpush2.msra.mxu0 0.0
        %280 = vmatprep.subr.mxu0 0.0
        %281 = vmatpush2.msra.mxu0 0.0
        %282 = vmatprep.subr.mxu0 0.0
        %283 = vmatpush2.msra.mxu0 0.0
        %284 = vmatprep.subr.mxu0 0.0
        %285 = vmatpush2.msra.mxu0 0.0
        %286 = vmatprep.subr.mxu0 0.0
        %287 = vmatpush2.msra.mxu0 0.0
        %288 = vmatprep.subr.mxu0 0.0
        %289 = vmatpush2.msra.mxu0 0.0
        %290 = vmatprep.subr.mxu0 0.0
        %291 = vmatpush2.msra.mxu0 0.0
        %292 = vmatprep.mubr.f32.mxu0 0.0
        %293 = vmatmul.mubr.f32.gmra.mxu0 %v223
        %v294 = vpop.f32.mrf.mxu0
        %v295 = vadd.f32 0.0, %v294
        %v296 = vpop.f32.mrf.mxu0
        %297 = vmatprep.mubr.f32.mxu0 0.0
        %298 = vmatmul.mubr.f32.gmra.mxu0 %v226
        %v299 = vpop.f32.mrf.mxu0
        %v300 = vadd.f32 0.0, %v299
        %v301 = vpop.f32.mrf.mxu0
        %302 = vdwg.mxu0
        %303 = vst.msk [vmem:[#allocation2] sm:$0xff] %vm221, %v295
        %304 = vst.msk [vmem:[#allocation2 + $0x8] sm:$0xff] %vm221, %v300
        %307 = vrot.lane.b32.xlu0 %v295, 120
        %v308 = vpop.permute.xlu0 %307
        %309 = vrot.lane.b32.xlu0 %v300, 120
        %v310 = vpop.permute.xlu0 %309
        %vm313 = vcmask 15360
        %314 = vst.msk [vmem:[#allocation3] sm:$0xff] %vm313, %v308
        %315 = vst.msk [vmem:[#allocation3 + $0x8] sm:$0xff] %vm313, %v310
        %316 = vst.msk [vmem:[%s213] sm:$0xff] %vm221, 0.0
        %317 = vst.msk [vmem:[%s213 + $0x8] sm:$0xff] %vm221, 0.0
      $region36: #{tpu_custom_call.1} parent=31 // pred_fallthru
        _
      %s318 = smul.u32 %s19, 16
      %v319 = vld [vmem:[#allocation3] sm:$0xff]
      %v320 = vld [vmem:[#allocation3 + $0x8] sm:$0xff]
      %s321 = scalar_lea.vmem [#allocation3], %s318
      %v322 = vld [vmem:[%s321] sm:$0xff]
      %v323 = vld [vmem:[%s321 + $0x8] sm:$0xff]
      %326 = vrot.lane.b32.xlu0 %v322, 127
      %v327 = vpop.permute.xlu0 %326
      %328 = vrot.lane.b32.xlu0 %v323, 127
      %v329 = vpop.permute.xlu0 %328
      %332 = vxpose.xlu0.b32.start [1/16] %v327, 128
      %333 = vxpose.xlu0.b32.cont [2/16] %v329, 128
      %334 = vxpose.xlu0.b32.cont [3/16] 0.0, 128
      %335 = vxpose.xlu0.b32.cont [4/16] 0.0, 128
      %336 = vxpose.xlu0.b32.cont [5/16] 0.0, 128
      %337 = vxpose.xlu0.b32.cont [6/16] 0.0, 128
      %338 = vxpose.xlu0.b32.cont [7/16] 0.0, 128
      %339 = vxpose.xlu0.b32.cont [8/16] 0.0, 128
      %340 = vxpose.xlu0.b32.cont [9/16] 0.0, 128
      %341 = vxpose.xlu0.b32.cont [10/16] 0.0, 128
      %342 = vxpose.xlu0.b32.cont [11/16] 0.0, 128
      %343 = vxpose.xlu0.b32.cont [12/16] 0.0, 128
      %344 = vxpose.xlu0.b32.cont [13/16] 0.0, 128
      %345 = vxpose.xlu0.b32.cont [14/16] 0.0, 128
      %346 = vxpose.xlu0.b32.cont [15/16] 0.0, 128
      %347 = vxpose.xlu0.b32.end [16/16] 0.0, 128
      %v348 = vpop.trf.xlu0
      %v349 = vpop.trf.xlu0
      %v350 = vpop.trf.xlu0
      %v351 = vpop.trf.xlu0
      %v352 = vpop.trf.xlu0
      %v353 = vpop.trf.xlu0
      %v354 = vpop.trf.xlu0
      %v355 = vpop.trf.xlu0
      %v356 = vpop.trf.xlu0
      %v357 = vpop.trf.xlu0
      %v358 = vpop.trf.xlu0
      %v359 = vpop.trf.xlu0
      %v360 = vpop.trf.xlu0
      %v361 = vpop.trf.xlu0
      %v362 = vpop.trf.xlu0
      %v363 = vpop.trf.xlu0
      %365 = vset.pattern.permute.xlu0 0
      %366 = vperm.xlu0 %365, %v319
      %v367 = vpop.permute.xlu0 %366
      %370 = vset.pattern.permute.xlu0 0
      %371 = vperm.xlu0 %370, %v320
      %v372 = vpop.permute.xlu0 %371
      %v374 = vlaneseq
      %v375 = vshrl.u32 %v374, 7
      %v376 = vsub.s32 0, %v375
      %v377 = vrot.slane %v348, %v376
      %v378 = vadd.f32 %v367, %v377
      %v379 = vadd.f32 %v372, %v377
      %vm380 = vcmp.gt.f32.partialorder %v378, 0.0
      %vm381 = vcmp.gt.f32.partialorder %v379, 0.0
      %v382 = vmul.f32 %v378, 0.2
      %v383 = vmul.f32 %v379, 0.2
      %v384 = vsel %vm380, %v378, %v382
      %v385 = vsel %vm381, %v379, %v383
      %v386 = vld [vmem:[%s208] sm:$0x3]
      %v387 = vld [vmem:[%s208 + $0x2] sm:$0x3]
      %v388 = vunpack.c.0.s8 %v386
      %v389 = vunpack.c.0.s8 %v387
      %v390 = vcvt.s32.f32 %v388
      %v391 = vcvt.s32.f32 %v389
      %vm392 = vcmask 130048
      %v393 = vsel %vm392, %v384, -inf
      %v394 = vsel %vm392, %v385, -inf
      %v395 = vmax.f32 %v393, %v394
      %v396 = vrot.slane %v395, 4
      %v397 = vmax.f32 %v395, %v396
      %v398 = vrot.slane %v397, 2
      %v399 = vmax.f32 %v397, %v398
      %v400 = vrot.slane %v399, 1
      %v401 = vmax.f32 %v399, %v400
      %v402 = vsub.f32 %v384, %v401
      %v403 = vsub.f32 %v385, %v401
      %v404 = vmul.f32 %v402, 1.442695
      %v405 = vpow.pop %v404
      %v406 = vmul.f32 %v403, 1.442695
      %v407 = vpow.pop %v406
      %v408 = vmul.f32 %v405, %v390
      %v409 = vmul.f32 %v407, %v391
      %v410 = vsel %vm392, %v408, 0.0
      %v411 = vsel %vm392, %v409, 0.0
      %v412 = vadd.f32 %v410, %v411
      %v413 = vrot.slane %v412, 4
      %v414 = vadd.f32 %v412, %v413
      %v415 = vrot.slane %v414, 2
      %v416 = vadd.f32 %v414, %v415
      %v417 = vrot.slane %v416, 1
      %v418 = vadd.f32 %v416, %v417
      %v419 = vmax.f32 %v418, 1e-30
      %v420 = vrcp.pop %v419
      %v421 = vmul.f32 %v419, %v420
      %v422 = vsub.f32 2.0, %v421
      %v423 = vmul.f32 %v420, %v422
      %v424 = vmul.f32 %v408, %v423
      %v425 = vmul.f32 %v409, %v423
      %s426 = scalar_lea.vmem [#allocation2], %s318
      %v427 = vld [vmem:[%s426] sm:$0xff]
      %v428 = vld [vmem:[%s426 + $0x8] sm:$0xff]
      %v430 = vsel %vm392, %v424, 0
      %v433 = vsel %vm392, %v425, 0
      %435 = vmatprep.subr.mxu0 0.0
      %436 = vmatpush1.msra.mxu0 0.0
      %437 = vmatprep.subr.mxu0 0.0
      %438 = vmatpush1.msra.mxu0 0.0
      %439 = vmatprep.subr.mxu0 0.0
      %440 = vmatpush1.msra.mxu0 0.0
      %441 = vmatprep.subr.mxu0 0.0
      %442 = vmatpush1.msra.mxu0 0.0
      %443 = vmatprep.subr.mxu0 0.0
      %444 = vmatpush1.msra.mxu0 0.0
      %445 = vmatprep.subr.mxu0 0.0
      %446 = vmatpush1.msra.mxu0 0.0
      %447 = vmatprep.subr.mxu0 0.0
      %448 = vmatpush1.msra.mxu0 0.0
      %449 = vmatprep.subr.mxu0 0.0
      %450 = vmatpush1.msra.mxu0 0.0
      %451 = vmatprep.subr.mxu0 0.0
      %452 = vmatpush1.msra.mxu0 0.0
      %453 = vmatprep.subr.mxu0 0.0
      %454 = vmatpush1.msra.mxu0 0.0
      %455 = vmatprep.subr.mxu0 0.0
      %456 = vmatpush1.msra.mxu0 0.0
      %457 = vmatprep.subr.mxu0 0.0
      %458 = vmatpush1.msra.mxu0 0.0
      %459 = vmatprep.subr.mxu0 0.0
      %460 = vmatpush1.msra.mxu0 0.0
      %461 = vmatprep.subr.mxu0 0.0
      %462 = vmatpush1.msra.mxu0 0.0
      %463 = vmatprep.subr.mxu0 0.0
      %464 = vmatpush1.msra.mxu0 %v428
      %465 = vmatprep.subr.mxu0 0.0
      %466 = vmatpush1.msra.mxu0 %v427
      %467 = vmatprep.subr.mxu0 0.0
      %468 = vmatpush2.msra.mxu0 0.0
      %469 = vmatprep.subr.mxu0 0.0
      %470 = vmatpush2.msra.mxu0 0.0
      %471 = vmatprep.subr.mxu0 0.0
      %472 = vmatpush2.msra.mxu0 0.0
      %473 = vmatprep.subr.mxu0 0.0
      %474 = vmatpush2.msra.mxu0 0.0
      %475 = vmatprep.subr.mxu0 0.0
      %476 = vmatpush2.msra.mxu0 0.0
      %477 = vmatprep.subr.mxu0 0.0
      %478 = vmatpush2.msra.mxu0 0.0
      %479 = vmatprep.subr.mxu0 0.0
      %480 = vmatpush2.msra.mxu0 0.0
      %481 = vmatprep.subr.mxu0 0.0
      %482 = vmatpush2.msra.mxu0 0.0
      %483 = vmatprep.subr.mxu0 0.0
      %484 = vmatpush2.msra.mxu0 0.0
      %485 = vmatprep.subr.mxu0 0.0
      %486 = vmatpush2.msra.mxu0 0.0
      %487 = vmatprep.subr.mxu0 0.0
      %488 = vmatpush2.msra.mxu0 0.0
      %489 = vmatprep.subr.mxu0 0.0
      %490 = vmatpush2.msra.mxu0 0.0
      %491 = vmatprep.subr.mxu0 0.0
      %492 = vmatpush2.msra.mxu0 0.0
      %493 = vmatprep.subr.mxu0 0.0
      %494 = vmatpush2.msra.mxu0 0.0
      %495 = vmatprep.subr.mxu0 0.0
      %496 = vmatpush2.msra.mxu0 0.0
      %497 = vmatprep.subr.mxu0 0.0
      %498 = vmatpush2.msra.mxu0 0.0
      %499 = vmatprep.mubr.f32.mxu0 0.0
      %500 = vmatmul.mubr.f32.gmra.mxu0 %v430
      %v501 = vpop.f32.mrf.mxu0
      %v502 = vadd.f32 0.0, %v501
      %v503 = vpop.f32.mrf.mxu0
      %504 = vmatprep.mubr.f32.mxu0 0.0
      %505 = vmatmul.mubr.f32.gmra.mxu0 %v433
      %v506 = vpop.f32.mrf.mxu0
      %v507 = vadd.f32 0.0, %v506
      %v508 = vpop.f32.mrf.mxu0
      %509 = vdwg.mxu0
      %v510 = vld [vmem:[%s213] sm:$0xff]
      %v511 = vld [vmem:[%s213 + $0x8] sm:$0xff]
      %v512 = vadd.f32 %v510, %v502
      %v513 = vadd.f32 %v511, %v507
      %vm514 = vcmask 64512
      %515 = vst.msk [vmem:[%s213] sm:$0xff] %vm514, %v512
      %516 = vst.msk [vmem:[%s213 + $0x8] sm:$0xff] %vm514, %v513
      // Predicated region
      $region37: #{tpu_custom_call.1} parent=31 // pred_check
        %p517 = pneg %p214
      $region38: #{tpu_custom_call.1} parent=31 // pred_check_branch
        %519 = sbr.rel (%p517) target = $region40
      $region39: #{tpu_custom_call.1} parent=31 // pred_region
        %v520 = vld [vmem:[%s213] sm:$0xff]
        %v521 = vld [vmem:[%s213 + $0x8] sm:$0xff]
        %vm522 = vcmp.gt.f32.partialorder %v520, 0.0
        %vm523 = vcmp.gt.f32.partialorder %v521, 0.0
        %v524 = vmin.f32 %v520, 0.0
        %v525 = vmin.f32 %v521, 0.0
        %v526 = vmul.f32 %v524, 1.442695
        %v527 = vpow.pop %v526
        %v528 = vmul.f32 %v525, 1.442695
        %v529 = vpow.pop %v528
        %v530 = vsub.f32 %v527, 1.0
        %v531 = vsub.f32 %v529, 1.0
        %v532 = vsel %vm522, %v520, %v530
        %v533 = vsel %vm523, %v521, %v531
        %534 = vst.msk [vmem:[%s213] sm:$0xff] %vm514, %v532
        %535 = vst.msk [vmem:[%s213 + $0x8] sm:$0xff] %vm514, %v533
      $region40: #{tpu_custom_call.1} parent=31 // pred_fallthru
        _
      %p536 = scmp.lt.s32.totalorder %s18, 1
      %s537 = scalar_select %p536, %s18, 1
      %s538 = smul.addr %s537, 2
      %s539 = smul.addr %s538, 8
      %s540 = scalar_lea.vmem %s3, %s539
      // Predicated region
      $region41: #{tpu_custom_call.1} parent=31 // pred_check
        %p541 = pneg %p119
      $region42: #{tpu_custom_call.1} parent=31 // pred_check_branch
        %543 = sbr.rel (%p541) target = $region44
      $region43: #{tpu_custom_call.1} parent=31 // pred_region
        _
      $region44: #{tpu_custom_call.1} parent=31 // pred_fallthru
        _
    $region32: #{tpu_custom_call.1} parent=5 // pred_fallthru
      _
    %p544 = scmp.le.s32.totalorder 2, %s9
    // Predicated region
    $region45: #{tpu_custom_call.1} parent=5 // pred_check
      %p545 = pneg %p544
    $region46: #{tpu_custom_call.1} parent=5 // pred_check_branch
      %547 = sbr.rel (%p545) target = $region48
    $region47: #{tpu_custom_call.1} parent=5 // pred_region
      %s548 = ssub.s32 %s9, 2
      // Predicated region
      $region49: #{tpu_custom_call.1} parent=47 // pred_check
        %p549 = pneg %p125
      $region50: #{tpu_custom_call.1} parent=47 // pred_check_branch
        %551 = sbr.rel (%p549) target = $region52
      $region51: #{tpu_custom_call.1} parent=47 // pred_region
        %p552 = scmp.lt.s32.totalorder %s20, 1
        %s553 = scalar_select %p552, %s20, 1
        %s554 = smul.addr %s553, 2
        %s555 = smul.addr %s554, 8
        %s556 = scalar_lea.vmem %s3, %s555
      $region52: #{tpu_custom_call.1} parent=47 // pred_fallthru
        _
    $region48: #{tpu_custom_call.1} parent=5 // pred_fallthru
      _
  $region6: #{tpu_custom_call.1} parent=0 // loop_footer
    %s13 = sadd.s32 1, %s9
  $region7: #{tpu_custom_call.1} parent=0 // loop_footer_branch
    %8 = sbr.rel target = $region3
  $region8: #{tpu_custom_call.1} parent=0 // loop_exit
    _

</llo_original>
